<compile_context>
chip_gen: v7x
topology: tpu7x:2x2x1
jax: 0.10.0
libtpu: 0.0.40
codegen_flags: <defaults>
</compile_context>

<pallas_src>
import jax
import jax.numpy as jnp
from jax.experimental import pallas as pl
from jax.experimental.pallas import tpu as pltpu


K_IN = 784          # model input features (28*28), unpadded in HBM
N_PAD = 128         # lane-dense padded class dim (real classes sliced out after)
TB_DEFAULT = 2048   # batch tile; amortizes per-step overhead, fits VMEM on v7x


def mlp_kernel(x_ref, w1_ref, b1_ref, w2_ref, b2_ref, o_ref):
    """Fused: out = relu(x @ W1 + b1) @ W2 + b2 for one batch tile.

    x arrives f32 straight from HBM and is cast to bf16 here (no wrapper pass);
    both matmuls use bf16 MXU operands with f32 accumulation.
    """
    x = x_ref[...].astype(jnp.bfloat16)                              # (TB, 784)
    w1 = w1_ref[...]                                                 # (784, H)   bf16
    b1 = b1_ref[...]                                                 # (1, H)     f32
    w2 = w2_ref[...]                                                 # (H, N_PAD) bf16
    b2 = b2_ref[...]                                                 # (1, N_PAD) f32

    h = jnp.dot(x, w1, preferred_element_type=jnp.float32) + b1      # (TB, H) f32
    h = jnp.maximum(h, 0.0)                                          # ReLU
    out = jnp.dot(h.astype(jnp.bfloat16), w2,
                  preferred_element_type=jnp.float32) + b2           # (TB, N_PAD) f32
    o_ref[...] = out.astype(o_ref.dtype)


def _round_up(a, m):
    return ((a + m - 1) // m) * m


def simple_nn_forward(x, w1, b1, w2, b2, *, tb=TB_DEFAULT):
    """JAX wrapper reproducing SimpleNN.forward.

    x: any shape whose trailing dims flatten to 784 (e.g. (B, 1, 28, 28)).
    w1: (784, hidden), b1: (1, hidden), w2: (hidden, num_classes), b2: (1, num_classes).
    Returns logits (B, num_classes) float32.
    """
    x2d = x.reshape(-1, K_IN).astype(jnp.float32)        # x.view(-1, 784); no pad pass
    B = x2d.shape[0]
    hidden = w1.shape[1]
    num_classes = w2.shape[1]
    assert num_classes <= N_PAD

    # Batch tile: f32 x tile -> multiple of 8 sublanes; at most `tb`; when B is
    # large enough, cap at ~B/2 so there are always >= 2 tiles (v7x dual-TC).
    tb_eff = min(tb, _round_up(B, 8))
    if B >= 16:
        tb_eff = min(tb_eff, _round_up(pl.cdiv(B, 2), 8))
    tb_eff = max(8, _round_up(tb_eff, 8))
    n_tiles = pl.cdiv(B, tb_eff)                         # ragged last tile masked

    # Tiny weight/bias operands: cast (and pad classes -> 128) once in the wrapper.
    w1_p = w1.astype(jnp.bfloat16)                                            # (784, H)
    b1_p = b1.reshape(1, hidden).astype(jnp.float32)                          # (1, H)
    w2_p = jnp.pad(w2.astype(jnp.float32),
                   ((0, 0), (0, N_PAD - num_classes))).astype(jnp.bfloat16)   # (H, 128)
    b2_p = jnp.pad(b2.reshape(1, num_classes).astype(jnp.float32),
                   ((0, 0), (0, N_PAD - num_classes)))                        # (1, 128)

    cost = pl.CostEstimate(
        flops=2 * B * (K_IN * hidden + hidden * num_classes),
        transcendentals=0,
        bytes_accessed=(B * K_IN * 4            # x (f32 in)
                        + K_IN * hidden * 2     # W1 (bf16)
                        + hidden * N_PAD * 2    # W2 (bf16)
                        + B * N_PAD * 4),       # logits out (f32)
    )

    out = pl.pallas_call(
        mlp_kernel,
        out_shape=jax.ShapeDtypeStruct((B, N_PAD), jnp.float32),
        grid_spec=pltpu.PrefetchScalarGridSpec(
            num_scalar_prefetch=0,
            grid=(n_tiles,),
            in_specs=[
                pl.BlockSpec((tb_eff, K_IN), lambda i: (i, 0)),    # x tile per step
                pl.BlockSpec((K_IN, hidden), lambda i: (0, 0)),    # weights resident
                pl.BlockSpec((1, hidden), lambda i: (0, 0)),
                pl.BlockSpec((hidden, N_PAD), lambda i: (0, 0)),
                pl.BlockSpec((1, N_PAD), lambda i: (0, 0)),
            ],
            out_specs=pl.BlockSpec((tb_eff, N_PAD), lambda i: (i, 0)),
        ),
        compiler_params=pltpu.CompilerParams(
            dimension_semantics=("parallel",),   # independent batch tiles
        ),
        cost_estimate=cost,
    )(x2d, w1_p, b1_p, w2_p, b2_p)

    return out[:, :num_classes]


def init_params(key, input_size=784, hidden_size=128, num_classes=10):
    """Deterministic init matching nn.Linear's U(-1/sqrt(fan_in), 1/sqrt(fan_in))."""
    k1, k2, k3, k4 = jax.random.split(key, 4)
    bound1 = 1.0 / jnp.sqrt(jnp.float32(input_size))
    bound2 = 1.0 / jnp.sqrt(jnp.float32(hidden_size))
    w1 = jax.random.uniform(k1, (input_size, hidden_size), jnp.float32,
                            minval=-bound1, maxval=bound1)
    b1 = jax.random.uniform(k2, (1, hidden_size), jnp.float32,
                            minval=-bound1, maxval=bound1)
    w2 = jax.random.uniform(k3, (hidden_size, num_classes), jnp.float32,
                            minval=-bound2, maxval=bound2)
    b2 = jax.random.uniform(k4, (1, num_classes), jnp.float32,
                            minval=-bound2, maxval=bound2)
    return w1, b1, w2, b2


if __name__ == "__main__":
    key = jax.random.PRNGKey(0)
    kx, kp = jax.random.split(key)

    # Small MNIST-like batch: (B, C, H, W) = (8, 1, 28, 28) -> flattens to (8, 784)
    x = jax.random.normal(kx, (8, 1, 28, 28), jnp.float32)
    w1, b1, w2, b2 = init_params(kp)

    out = simple_nn_forward(x, w1, b1, w2, b2)
    out = jax.block_until_ready(out)

    # Pure-JAX f32 reference of the forward semantics; tolerance loosened because
    # the kernel feeds the MXU bf16 operands (f32 accumulation).
    x2d = x.reshape(-1, 784)
    ref = jnp.maximum(x2d @ w1 + b1, 0.0) @ w2 + b2
    assert out.shape == (8, 10)
    assert jnp.allclose(out, ref, atol=3e-2, rtol=3e-2), \
        f"max abs diff {jnp.max(jnp.abs(out - ref))}"

    print("KERNEL_OK")
</pallas_src>

<mosaic_0001>
module attributes {stable_mosaic.version = 11 : i64} {
  func.func @mlp_kernel(%arg0: i32, %arg1: memref<8x784xf32, #tpu.memory_space<vmem>>, %arg2: memref<784x128xbf16, #tpu.memory_space<vmem>>, %arg3: memref<1x128xf32, #tpu.memory_space<vmem>>, %arg4: memref<128x128xbf16, #tpu.memory_space<vmem>>, %arg5: memref<1x128xf32, #tpu.memory_space<vmem>>, %arg6: memref<8x128xf32, #tpu.memory_space<vmem>>) attributes {dimension_semantics = [#tpu.dimension_semantics<parallel>], iteration_bounds = array<i64: 1>, scalar_prefetch = 0 : i64, scratch_operands = 0 : i64, tpu.core_type = #tpu.core_type<tc>, window_params = [{transform_indices = @transform_0, window_bounds = array<i64: 8, 784>}, {pipeline_mode = #tpu.pipeline_mode<synchronous>, transform_indices = @transform_1, window_bounds = array<i64: 784, 128>}, {pipeline_mode = #tpu.pipeline_mode<synchronous>, transform_indices = @transform_2, window_bounds = array<i64: 1, 128>}, {pipeline_mode = #tpu.pipeline_mode<synchronous>, transform_indices = @transform_3, window_bounds = array<i64: 128, 128>}, {pipeline_mode = #tpu.pipeline_mode<synchronous>, transform_indices = @transform_4, window_bounds = array<i64: 1, 128>}, {transform_indices = @transform_5, window_bounds = array<i64: 8, 128>}]} {
    %c0 = arith.constant 0 : index
    %c0_0 = arith.constant 0 : index
    %0 = vector.load %arg1[%c0, %c0_0] : memref<8x784xf32, #tpu.memory_space<vmem>>, vector<8x784xf32>
    %1 = arith.truncf %0 : vector<8x784xf32> to vector<8x784xbf16>
    %c0_1 = arith.constant 0 : index
    %c0_2 = arith.constant 0 : index
    %2 = vector.load %arg2[%c0_1, %c0_2] : memref<784x128xbf16, #tpu.memory_space<vmem>>, vector<784x128xbf16>
    %c0_3 = arith.constant 0 : index
    %c0_4 = arith.constant 0 : index
    %3 = vector.load %arg3[%c0_3, %c0_4] : memref<1x128xf32, #tpu.memory_space<vmem>>, vector<1x128xf32>
    %c0_5 = arith.constant 0 : index
    %c0_6 = arith.constant 0 : index
    %4 = vector.load %arg4[%c0_5, %c0_6] : memref<128x128xbf16, #tpu.memory_space<vmem>>, vector<128x128xbf16>
    %c0_7 = arith.constant 0 : index
    %c0_8 = arith.constant 0 : index
    %5 = vector.load %arg5[%c0_7, %c0_8] : memref<1x128xf32, #tpu.memory_space<vmem>>, vector<1x128xf32>
    %cst = arith.constant dense<0.000000e+00> : vector<8x128xf32>
    %6 = tpu.matmul %1, %2, %cst {dimension_numbers = #tpu.dot_dimension_numbers<[1], [0], [0], [1], [0, 0, 1, 1], [], []>} : vector<8x784xbf16>, vector<784x128xbf16>, vector<8x128xf32> -> vector<8x128xf32>
    %7 = vector.broadcast %3 : vector<1x128xf32> to vector<8x128xf32>
    %8 = arith.addf %6, %7 : vector<8x128xf32>
    %cst_9 = arith.constant 0.000000e+00 : f32
    %9 = vector.broadcast %cst_9 : f32 to vector<8x128xf32>
    %10 = arith.maximumf %8, %9 : vector<8x128xf32>
    %11 = arith.truncf %10 : vector<8x128xf32> to vector<8x128xbf16>
    %cst_10 = arith.constant dense<0.000000e+00> : vector<8x128xf32>
    %12 = tpu.matmul %11, %4, %cst_10 {dimension_numbers = #tpu.dot_dimension_numbers<[1], [0], [0], [1], [0, 0, 1, 1], [], []>} : vector<8x128xbf16>, vector<128x128xbf16>, vector<8x128xf32> -> vector<8x128xf32>
    %13 = vector.broadcast %5 : vector<1x128xf32> to vector<8x128xf32>
    %14 = arith.addf %12, %13 : vector<8x128xf32>
    %c0_11 = arith.constant 0 : index
    %c0_12 = arith.constant 0 : index
    %15 = vector.load %arg6[%c0_11, %c0_12] : memref<8x128xf32, #tpu.memory_space<vmem>>, vector<8x128xf32>
    tpu.vector_store %arg6[%c0_11, %c0_12], %14 {strides = array<i32>} : memref<8x128xf32, #tpu.memory_space<vmem>>, vector<8x128xf32>,
    return
  }
  func.func @transform_0(%arg0: i32) -> (i32, i32) {
    %c0_i32 = arith.constant 0 : i32
    %c0_i32_0 = arith.constant 0 : i32
    return %arg0, %c0_i32 : i32, i32
  }
  func.func @transform_1(%arg0: i32) -> (i32, i32) {
    %c0_i32 = arith.constant 0 : i32
    %c0_i32_0 = arith.constant 0 : i32
    %c0_i32_1 = arith.constant 0 : i32
    return %c0_i32, %c0_i32_0 : i32, i32
  }
  func.func @transform_2(%arg0: i32) -> (i32, i32) {
    %c0_i32 = arith.constant 0 : i32
    %c0_i32_0 = arith.constant 0 : i32
    %c0_i32_1 = arith.constant 0 : i32
    return %c0_i32, %c0_i32_0 : i32, i32
  }
  func.func @transform_3(%arg0: i32) -> (i32, i32) {
    %c0_i32 = arith.constant 0 : i32
    %c0_i32_0 = arith.constant 0 : i32
    %c0_i32_1 = arith.constant 0 : i32
    return %c0_i32, %c0_i32_0 : i32, i32
  }
  func.func @transform_4(%arg0: i32) -> (i32, i32) {
    %c0_i32 = arith.constant 0 : i32
    %c0_i32_0 = arith.constant 0 : i32
    %c0_i32_1 = arith.constant 0 : i32
    return %c0_i32, %c0_i32_0 : i32, i32
  }
  func.func @transform_5(%arg0: i32) -> (i32, i32) {
    %c0_i32 = arith.constant 0 : i32
    %c0_i32_0 = arith.constant 0 : i32
    return %arg0, %c0_i32 : i32, i32
  }
}

</mosaic_0001>

<llo_original>
// kernel: tpu_custom_call.1
$region0: #{tpu_custom_call.1}
  #allocation0 [shape = 'u32[]', space=smem, size = 0x4, offset = 0x4, fixed_abs, tag = 'smem constant byte address 0x4 - core index']
  #allocation1 [shape = 'u32[144,128]{1,0:T(1,128)}', space=vmem, size = 0x12000, scoped, tag = 'internal scratch']
  %s0 = inlined_call_operand.hbm [shape: f32[8,784], index: 0, kind: input, shape index: {}]
  %s1 = inlined_call_operand.hbm [shape: bf16[784,128], index: 1, kind: input, shape index: {}]
  %s2 = inlined_call_operand.vmem [shape: f32[1,128], index: 2, kind: input, shape index: {}]
  %s3 = inlined_call_operand.hbm [shape: bf16[128,128], index: 3, kind: input, shape index: {}]
  %s4 = inlined_call_operand.vmem [shape: f32[1,128], index: 4, kind: input, shape index: {}]
  %s5 = inlined_call_operand.hbm [shape: f32[8,128], index: 5, kind: output, shape index: {}]
  %s6 = sld [smem:[#allocation0]]
  $region42: #{tpu_custom_call.1} parent=0
    _
  %s8 = ssub.s32 1, %s6
  %s9 = scalar_select 0, %s8, %s6
  $region1: #{tpu_custom_call.1} parent=0
    #allocation2 [shape = 'u8[28672]{0}', space=vmem, size = 0x7000, scoped, tag = 'input window, operand 0, single buffered']
    #allocation3 [shape = 's32[1]{0}', space=sflag, size = 0x4, scoped, tag = 'scoped memory for tpu_custom_call.1']
    #allocation4 [shape = 's32[1]{0}', space=sflag, size = 0x4, scoped, tag = 'scoped memory for tpu_custom_call.1']
    #allocation5 [shape = 'u8[200704]{0}', space=vmem, size = 0x31000, scoped, tag = 'input window, operand 1, single buffered']
    #allocation6 [shape = 's32[1]{0}', space=sflag, size = 0x4, scoped, tag = 'scoped memory for tpu_custom_call.1']
    #allocation7 [shape = 'u8[32768]{0}', space=vmem, size = 0x8000, scoped, tag = 'input window, operand 3, single buffered']
    #allocation8 [shape = 'u8[4096]{0}', space=vmem, size = 0x1000, scoped, tag = 'output window, operand 0, single buffered']
    %10 = vsyncpa [#allocation3], 0
    %11 = vsyncpa [#allocation6], 0
    %12 = vsyncpa [#allocation4], 0
    // Predicated region
    $region2: #{tpu_custom_call.1} parent=1 // pred_check
      _
    $region3: #{tpu_custom_call.1} parent=1 // pred_check_branch
      %14 = sbr.rel (0) target = $region5
    $region4: #{tpu_custom_call.1} parent=1 // pred_region
      %s16 = ssub.s32 896, 896
      %17 = vsyncadd [#allocation3], %s16
      %s19 = sshll.u32 [#allocation2], 4
      %s20 = int_to_ptr.vmem [resolvable:$true] %s19
      %22 = dma.hbm_to_vmem [thread:$0]  %s0, 896, %s20, [#allocation3]
    $region5: #{tpu_custom_call.1} parent=1 // pred_fallthru
      _
    // Predicated region
    $region6: #{tpu_custom_call.1} parent=1 // pred_check
      _
    $region7: #{tpu_custom_call.1} parent=1 // pred_check_branch
      %24 = sbr.rel (0) target = $region9
    $region8: #{tpu_custom_call.1} parent=1 // pred_region
      %s26 = ssub.s32 6272, 6272
      %27 = vsyncadd [#allocation6], %s26
      %s28 = sshll.u32 [#allocation5], 4
      %s29 = int_to_ptr.vmem [resolvable:$true] %s28
      %34 = dma.hbm_to_vmem [thread:$0]  %s1, 6272, %s29, [#allocation6], 64, 64, 4
    $region9: #{tpu_custom_call.1} parent=1 // pred_fallthru
      _
    // Predicated region
    $region10: #{tpu_custom_call.1} parent=1 // pred_check
      _
    $region11: #{tpu_custom_call.1} parent=1 // pred_check_branch
      %36 = sbr.rel (0) target = $region13
    $region12: #{tpu_custom_call.1} parent=1 // pred_region
      _
    $region13: #{tpu_custom_call.1} parent=1 // pred_fallthru
      _
    // Predicated region
    $region14: #{tpu_custom_call.1} parent=1 // pred_check
      _
    $region15: #{tpu_custom_call.1} parent=1 // pred_check_branch
      %38 = sbr.rel (0) target = $region17
    $region16: #{tpu_custom_call.1} parent=1 // pred_region
      %s40 = ssub.s32 1024, 1024
      %41 = vsyncadd [#allocation6], %s40
      %s42 = sshll.u32 [#allocation7], 4
      %s43 = int_to_ptr.vmem [resolvable:$true] %s42
      %48 = dma.hbm_to_vmem [thread:$0]  %s3, 1024, %s43, [#allocation6], 64, 64, 4
    $region17: #{tpu_custom_call.1} parent=1 // pred_fallthru
      _
    // Predicated region
    $region18: #{tpu_custom_call.1} parent=1 // pred_check
      _
    $region19: #{tpu_custom_call.1} parent=1 // pred_check_branch
      %50 = sbr.rel (0) target = $region21
    $region20: #{tpu_custom_call.1} parent=1 // pred_region
      _
    $region21: #{tpu_custom_call.1} parent=1 // pred_fallthru
      _
    // Predicated region
    $region22: #{tpu_custom_call.1} parent=1 // pred_check
      _
    $region23: #{tpu_custom_call.1} parent=1 // pred_check_branch
      %52 = sbr.rel (0) target = $region25
    $region24: #{tpu_custom_call.1} parent=1 // pred_region
      %53 = dma.done [#allocation3], 896
    $region25: #{tpu_custom_call.1} parent=1 // pred_fallthru
      _
    // Predicated region
    $region26: #{tpu_custom_call.1} parent=1 // pred_check
      _
    $region27: #{tpu_custom_call.1} parent=1 // pred_check_branch
      %55 = sbr.rel (0) target = $region29
    $region28: #{tpu_custom_call.1} parent=1 // pred_region
      %56 = dma.done [#allocation6], 6272
    $region29: #{tpu_custom_call.1} parent=1 // pred_fallthru
      _
    // Predicated region
    $region30: #{tpu_custom_call.1} parent=1 // pred_check
      _
    $region31: #{tpu_custom_call.1} parent=1 // pred_check_branch
      %58 = sbr.rel (0) target = $region33
    $region32: #{tpu_custom_call.1} parent=1 // pred_region
      %59 = dma.done [#allocation6], 1024
    $region33: #{tpu_custom_call.1} parent=1 // pred_fallthru
      _
    %v61 = vld [vmem:[#allocation2] sm:$0xff]
    %v62 = vld [vmem:[#allocation2 + $0x8] sm:$0xff]
    %v63 = vld [vmem:[#allocation2 + $0x10] sm:$0xff]
    %v64 = vld [vmem:[#allocation2 + $0x18] sm:$0xff]
    %v65 = vld [vmem:[#allocation2 + $0x20] sm:$0xff]
    %v66 = vld [vmem:[#allocation2 + $0x28] sm:$0xff]
    %v67 = vld [vmem:[#allocation2 + $0x30] sm:$0xff]
    %v68 = vpack.c.bf16 %v61, %v61
    %v69 = vpack.c.bf16 %v62, %v62
    %v70 = vpack.c.bf16 %v63, %v63
    %v71 = vpack.c.bf16 %v64, %v64
    %v72 = vpack.c.bf16 %v65, %v65
    %v73 = vpack.c.bf16 %v66, %v66
    %v74 = vpack.c.bf16 %v67, %v67
    %v75 = vld [vmem:[#allocation5] sm:$0xf]
    %v76 = vld [vmem:[#allocation5 + $0x4] sm:$0xf]
    %v77 = vld [vmem:[#allocation5 + $0x8] sm:$0xf]
    %v78 = vld [vmem:[#allocation5 + $0xc] sm:$0xf]
    %v79 = vld [vmem:[#allocation5 + $0x10] sm:$0xf]
    %v80 = vld [vmem:[#allocation5 + $0x14] sm:$0xf]
    %v81 = vld [vmem:[#allocation5 + $0x18] sm:$0xf]
    %v82 = vld [vmem:[#allocation5 + $0x1c] sm:$0xf]
    %v83 = vld [vmem:[#allocation5 + $0x20] sm:$0xf]
    %v84 = vld [vmem:[#allocation5 + $0x24] sm:$0xf]
    %v85 = vld [vmem:[#allocation5 + $0x28] sm:$0xf]
    %v86 = vld [vmem:[#allocation5 + $0x2c] sm:$0xf]
    %v87 = vld [vmem:[#allocation5 + $0x30] sm:$0xf]
    %v88 = vld [vmem:[#allocation5 + $0x34] sm:$0xf]
    %v89 = vld [vmem:[#allocation5 + $0x38] sm:$0xf]
    %v90 = vld [vmem:[#allocation5 + $0x3c] sm:$0xf]
    %v91 = vld [vmem:[#allocation5 + $0x40] sm:$0xf]
    %v92 = vld [vmem:[#allocation5 + $0x44] sm:$0xf]
    %v93 = vld [vmem:[#allocation5 + $0x48] sm:$0xf]
    %v94 = vld [vmem:[#allocation5 + $0x4c] sm:$0xf]
    %v95 = vld [vmem:[#allocation5 + $0x50] sm:$0xf]
    %v96 = vld [vmem:[#allocation5 + $0x54] sm:$0xf]
    %v97 = vld [vmem:[#allocation5 + $0x58] sm:$0xf]
    %v98 = vld [vmem:[#allocation5 + $0x5c] sm:$0xf]
    %v99 = vld [vmem:[#allocation5 + $0x60] sm:$0xf]
    %v100 = vld [vmem:[#allocation5 + $0x64] sm:$0xf]
    %v101 = vld [vmem:[#allocation5 + $0x68] sm:$0xf]
    %v102 = vld [vmem:[#allocation5 + $0x6c] sm:$0xf]
    %v103 = vld [vmem:[#allocation5 + $0x70] sm:$0xf]
    %v104 = vld [vmem:[#allocation5 + $0x74] sm:$0xf]
    %v105 = vld [vmem:[#allocation5 + $0x78] sm:$0xf]
    %v106 = vld [vmem:[#allocation5 + $0x7c] sm:$0xf]
    %v107 = vld [vmem:[#allocation5 + $0x80] sm:$0xf]
    %v108 = vld [vmem:[#allocation5 + $0x84] sm:$0xf]
    %v109 = vld [vmem:[#allocation5 + $0x88] sm:$0xf]
    %v110 = vld [vmem:[#allocation5 + $0x8c] sm:$0xf]
    %v111 = vld [vmem:[#allocation5 + $0x90] sm:$0xf]
    %v112 = vld [vmem:[#allocation5 + $0x94] sm:$0xf]
    %v113 = vld [vmem:[#allocation5 + $0x98] sm:$0xf]
    %v114 = vld [vmem:[#allocation5 + $0x9c] sm:$0xf]
    %v115 = vld [vmem:[#allocation5 + $0xa0] sm:$0xf]
    %v116 = vld [vmem:[#allocation5 + $0xa4] sm:$0xf]
    %v117 = vld [vmem:[#allocation5 + $0xa8] sm:$0xf]
    %v118 = vld [vmem:[#allocation5 + $0xac] sm:$0xf]
    %v119 = vld [vmem:[#allocation5 + $0xb0] sm:$0xf]
    %v120 = vld [vmem:[#allocation5 + $0xb4] sm:$0xf]
    %v121 = vld [vmem:[#allocation5 + $0xb8] sm:$0xf]
    %v122 = vld [vmem:[#allocation5 + $0xbc] sm:$0xf]
    %v123 = vld [vmem:[#allocation5 + $0xc0] sm:$0xf]
    %v124 = vld [vmem:[#allocation5 + $0xc4] sm:$0xf]
    %v125 = vld [vmem:[#allocation5 + $0xc8] sm:$0xf]
    %v126 = vld [vmem:[#allocation5 + $0xcc] sm:$0xf]
    %v127 = vld [vmem:[#allocation5 + $0xd0] sm:$0xf]
    %v128 = vld [vmem:[#allocation5 + $0xd4] sm:$0xf]
    %v129 = vld [vmem:[#allocation5 + $0xd8] sm:$0xf]
    %v130 = vld [vmem:[#allocation5 + $0xdc] sm:$0xf]
    %v131 = vld [vmem:[#allocation5 + $0xe0] sm:$0xf]
    %v132 = vld [vmem:[#allocation5 + $0xe4] sm:$0xf]
    %v133 = vld [vmem:[#allocation5 + $0xe8] sm:$0xf]
    %v134 = vld [vmem:[#allocation5 + $0xec] sm:$0xf]
    %v135 = vld [vmem:[#allocation5 + $0xf0] sm:$0xf]
    %v136 = vld [vmem:[#allocation5 + $0xf4] sm:$0xf]
    %v137 = vld [vmem:[#allocation5 + $0xf8] sm:$0xf]
    %v138 = vld [vmem:[#allocation5 + $0xfc] sm:$0xf]
    %v139 = vld [vmem:[#allocation5 + $0x100] sm:$0xf]
    %v140 = vld [vmem:[#allocation5 + $0x104] sm:$0xf]
    %v141 = vld [vmem:[#allocation5 + $0x108] sm:$0xf]
    %v142 = vld [vmem:[#allocation5 + $0x10c] sm:$0xf]
    %v143 = vld [vmem:[#allocation5 + $0x110] sm:$0xf]
    %v144 = vld [vmem:[#allocation5 + $0x114] sm:$0xf]
    %v145 = vld [vmem:[#allocation5 + $0x118] sm:$0xf]
    %v146 = vld [vmem:[#allocation5 + $0x11c] sm:$0xf]
    %v147 = vld [vmem:[#allocation5 + $0x120] sm:$0xf]
    %v148 = vld [vmem:[#allocation5 + $0x124] sm:$0xf]
    %v149 = vld [vmem:[#allocation5 + $0x128] sm:$0xf]
    %v150 = vld [vmem:[#allocation5 + $0x12c] sm:$0xf]
    %v151 = vld [vmem:[#allocation5 + $0x130] sm:$0xf]
    %v152 = vld [vmem:[#allocation5 + $0x134] sm:$0xf]
    %v153 = vld [vmem:[#allocation5 + $0x138] sm:$0xf]
    %v154 = vld [vmem:[#allocation5 + $0x13c] sm:$0xf]
    %v155 = vld [vmem:[#allocation5 + $0x140] sm:$0xf]
    %v156 = vld [vmem:[#allocation5 + $0x144] sm:$0xf]
    %v157 = vld [vmem:[#allocation5 + $0x148] sm:$0xf]
    %v158 = vld [vmem:[#allocation5 + $0x14c] sm:$0xf]
    %v159 = vld [vmem:[#allocation5 + $0x150] sm:$0xf]
    %v160 = vld [vmem:[#allocation5 + $0x154] sm:$0xf]
    %v161 = vld [vmem:[#allocation5 + $0x158] sm:$0xf]
    %v162 = vld [vmem:[#allocation5 + $0x15c] sm:$0xf]
    %v163 = vld [vmem:[#allocation5 + $0x160] sm:$0xf]
    %v164 = vld [vmem:[#allocation5 + $0x164] sm:$0xf]
    %v165 = vld [vmem:[#allocation5 + $0x168] sm:$0xf]
    %v166 = vld [vmem:[#allocation5 + $0x16c] sm:$0xf]
    %v167 = vld [vmem:[#allocation5 + $0x170] sm:$0xf]
    %v168 = vld [vmem:[#allocation5 + $0x174] sm:$0xf]
    %v169 = vld [vmem:[#allocation5 + $0x178] sm:$0xf]
    %v170 = vld [vmem:[#allocation5 + $0x17c] sm:$0xf]
    %v171 = vld [vmem:[#allocation5 + $0x180] sm:$0xf]
    %v172 = vld [vmem:[#allocation5 + $0x184] sm:$0xf]
    %v173 = vld [vmem:[%s2] sm:$0x1]
    %v174 = vld [vmem:[#allocation7] sm:$0xf]
    %v175 = vld [vmem:[#allocation7 + $0x4] sm:$0xf]
    %v176 = vld [vmem:[#allocation7 + $0x8] sm:$0xf]
    %v177 = vld [vmem:[#allocation7 + $0xc] sm:$0xf]
    %v178 = vld [vmem:[#allocation7 + $0x10] sm:$0xf]
    %v179 = vld [vmem:[#allocation7 + $0x14] sm:$0xf]
    %v180 = vld [vmem:[#allocation7 + $0x18] sm:$0xf]
    %v181 = vld [vmem:[#allocation7 + $0x1c] sm:$0xf]
    %v182 = vld [vmem:[#allocation7 + $0x20] sm:$0xf]
    %v183 = vld [vmem:[#allocation7 + $0x24] sm:$0xf]
    %v184 = vld [vmem:[#allocation7 + $0x28] sm:$0xf]
    %v185 = vld [vmem:[#allocation7 + $0x2c] sm:$0xf]
    %v186 = vld [vmem:[#allocation7 + $0x30] sm:$0xf]
    %v187 = vld [vmem:[#allocation7 + $0x34] sm:$0xf]
    %v188 = vld [vmem:[#allocation7 + $0x38] sm:$0xf]
    %v189 = vld [vmem:[#allocation7 + $0x3c] sm:$0xf]
    %v190 = vld [vmem:[%s4] sm:$0x1]
    %v192 = vlaneseq
    %v193 = vshrl.u32 %v192, 7
    %v194 = vsub.s32 0, %v193
    %v195 = vrot.slane %v173, %v194
    %v295 = vunpack.c.l.b16 %v75
    %v296 = vunpack.c.l.b16 %v76
    %v297 = vunpack.c.l.b16 %v77
    %v298 = vunpack.c.l.b16 %v78
    %v299 = vunpack.c.l.b16 %v79
    %v300 = vunpack.c.l.b16 %v80
    %v301 = vunpack.c.l.b16 %v81
    %v302 = vunpack.c.l.b16 %v82
    %v303 = vunpack.c.l.b16 %v83
    %v304 = vunpack.c.l.b16 %v84
    %v305 = vunpack.c.l.b16 %v85
    %v306 = vunpack.c.l.b16 %v86
    %v307 = vunpack.c.l.b16 %v87
    %v308 = vunpack.c.l.b16 %v88
    %v309 = vunpack.c.l.b16 %v89
    %v310 = vunpack.c.l.b16 %v90
    %v311 = vunpack.c.l.b16 %v91
    %v312 = vunpack.c.l.b16 %v92
    %v313 = vunpack.c.l.b16 %v93
    %v314 = vunpack.c.l.b16 %v94
    %v315 = vunpack.c.l.b16 %v95
    %v316 = vunpack.c.l.b16 %v96
    %v317 = vunpack.c.l.b16 %v97
    %v318 = vunpack.c.l.b16 %v98
    %v319 = vunpack.c.l.b16 %v99
    %v320 = vunpack.c.l.b16 %v100
    %v321 = vunpack.c.l.b16 %v101
    %v322 = vunpack.c.l.b16 %v102
    %v323 = vunpack.c.l.b16 %v103
    %v324 = vunpack.c.l.b16 %v104
    %v325 = vunpack.c.l.b16 %v105
    %v326 = vunpack.c.l.b16 %v106
    %v327 = vunpack.c.l.b16 %v107
    %v328 = vunpack.c.l.b16 %v108
    %v329 = vunpack.c.l.b16 %v109
    %v330 = vunpack.c.l.b16 %v110
    %v331 = vunpack.c.l.b16 %v111
    %v332 = vunpack.c.l.b16 %v112
    %v333 = vunpack.c.l.b16 %v113
    %v334 = vunpack.c.l.b16 %v114
    %v335 = vunpack.c.l.b16 %v115
    %v336 = vunpack.c.l.b16 %v116
    %v337 = vunpack.c.l.b16 %v117
    %v338 = vunpack.c.l.b16 %v118
    %v339 = vunpack.c.l.b16 %v119
    %v340 = vunpack.c.l.b16 %v120
    %v341 = vunpack.c.l.b16 %v121
    %v342 = vunpack.c.l.b16 %v122
    %v343 = vunpack.c.l.b16 %v123
    %v344 = vunpack.c.l.b16 %v124
    %v345 = vunpack.c.l.b16 %v125
    %v346 = vunpack.c.l.b16 %v126
    %v347 = vunpack.c.l.b16 %v127
    %v348 = vunpack.c.l.b16 %v128
    %v349 = vunpack.c.l.b16 %v129
    %v350 = vunpack.c.l.b16 %v130
    %v351 = vunpack.c.l.b16 %v131
    %v352 = vunpack.c.l.b16 %v132
    %v353 = vunpack.c.l.b16 %v133
    %v354 = vunpack.c.l.b16 %v134
    %v355 = vunpack.c.l.b16 %v135
    %v356 = vunpack.c.l.b16 %v136
    %v357 = vunpack.c.l.b16 %v137
    %v358 = vunpack.c.l.b16 %v138
    %v359 = vunpack.c.l.b16 %v139
    %v360 = vunpack.c.l.b16 %v140
    %v361 = vunpack.c.l.b16 %v141
    %v362 = vunpack.c.l.b16 %v142
    %v363 = vunpack.c.l.b16 %v143
    %v364 = vunpack.c.l.b16 %v144
    %v365 = vunpack.c.l.b16 %v145
    %v366 = vunpack.c.l.b16 %v146
    %v367 = vunpack.c.l.b16 %v147
    %v368 = vunpack.c.l.b16 %v148
    %v369 = vunpack.c.l.b16 %v149
    %v370 = vunpack.c.l.b16 %v150
    %v371 = vunpack.c.l.b16 %v151
    %v372 = vunpack.c.l.b16 %v152
    %v373 = vunpack.c.l.b16 %v153
    %v374 = vunpack.c.l.b16 %v154
    %v375 = vunpack.c.l.b16 %v155
    %v376 = vunpack.c.l.b16 %v156
    %v377 = vunpack.c.l.b16 %v157
    %v378 = vunpack.c.l.b16 %v158
    %v379 = vunpack.c.l.b16 %v159
    %v380 = vunpack.c.l.b16 %v160
    %v381 = vunpack.c.l.b16 %v161
    %v382 = vunpack.c.l.b16 %v162
    %v383 = vunpack.c.l.b16 %v163
    %v384 = vunpack.c.l.b16 %v164
    %v385 = vunpack.c.l.b16 %v165
    %v386 = vunpack.c.l.b16 %v166
    %v387 = vunpack.c.l.b16 %v167
    %v388 = vunpack.c.l.b16 %v168
    %v389 = vunpack.c.l.b16 %v169
    %v390 = vunpack.c.l.b16 %v170
    %v391 = vunpack.c.l.b16 %v171
    %v392 = vunpack.c.l.b16 %v172
    %v393 = vpack.c.b16 %v296, %v295
    %v394 = vpack.c.b16 %v298, %v297
    %v395 = vpack.c.b16 %v300, %v299
    %v396 = vpack.c.b16 %v302, %v301
    %v397 = vpack.c.b16 %v304, %v303
    %v398 = vpack.c.b16 %v306, %v305
    %v399 = vpack.c.b16 %v308, %v307
    %v400 = vpack.c.b16 %v310, %v309
    %v401 = vpack.c.b16 %v312, %v311
    %v402 = vpack.c.b16 %v314, %v313
    %v403 = vpack.c.b16 %v316, %v315
    %v404 = vpack.c.b16 %v318, %v317
    %v405 = vpack.c.b16 %v320, %v319
    %v406 = vpack.c.b16 %v322, %v321
    %v407 = vpack.c.b16 %v324, %v323
    %v408 = vpack.c.b16 %v326, %v325
    %v409 = vpack.c.b16 %v328, %v327
    %v410 = vpack.c.b16 %v330, %v329
    %v411 = vpack.c.b16 %v332, %v331
    %v412 = vpack.c.b16 %v334, %v333
    %v413 = vpack.c.b16 %v336, %v335
    %v414 = vpack.c.b16 %v338, %v337
    %v415 = vpack.c.b16 %v340, %v339
    %v416 = vpack.c.b16 %v342, %v341
    %v417 = vpack.c.b16 %v344, %v343
    %v418 = vpack.c.b16 %v346, %v345
    %v419 = vpack.c.b16 %v348, %v347
    %v420 = vpack.c.b16 %v350, %v349
    %v421 = vpack.c.b16 %v352, %v351
    %v422 = vpack.c.b16 %v354, %v353
    %v423 = vpack.c.b16 %v356, %v355
    %v424 = vpack.c.b16 %v358, %v357
    %v425 = vpack.c.b16 %v360, %v359
    %v426 = vpack.c.b16 %v362, %v361
    %v427 = vpack.c.b16 %v364, %v363
    %v428 = vpack.c.b16 %v366, %v365
    %v429 = vpack.c.b16 %v368, %v367
    %v430 = vpack.c.b16 %v370, %v369
    %v431 = vpack.c.b16 %v372, %v371
    %v432 = vpack.c.b16 %v374, %v373
    %v433 = vpack.c.b16 %v376, %v375
    %v434 = vpack.c.b16 %v378, %v377
    %v435 = vpack.c.b16 %v380, %v379
    %v436 = vpack.c.b16 %v382, %v381
    %v437 = vpack.c.b16 %v384, %v383
    %v438 = vpack.c.b16 %v386, %v385
    %v439 = vpack.c.b16 %v388, %v387
    %v440 = vpack.c.b16 %v390, %v389
    %v441 = vpack.c.b16 %v392, %v391
    %vm491 = vcmask 130048
    %v493 = vsel %vm491, %v74, 0
    %495 = vmatprep.subr.bf16.mxu0 0
    %496 = vmatpush1.bf16.msra.mxu0 %v393
    %497 = vmatprep.subr.bf16.mxu0 0
    %498 = vmatpush1.bf16.msra.mxu0 %v394
    %499 = vmatprep.subr.bf16.mxu0 0
    %500 = vmatpush1.bf16.msra.mxu0 %v395
    %501 = vmatprep.subr.bf16.mxu0 0
    %502 = vmatpush1.bf16.msra.mxu0 %v396
    %503 = vmatprep.subr.bf16.mxu0 0
    %504 = vmatpush1.bf16.msra.mxu0 %v397
    %505 = vmatprep.subr.bf16.mxu0 0
    %506 = vmatpush1.bf16.msra.mxu0 %v398
    %507 = vmatprep.subr.bf16.mxu0 0
    %508 = vmatpush1.bf16.msra.mxu0 %v399
    %509 = vmatprep.subr.bf16.mxu0 0
    %510 = vmatpush1.bf16.msra.mxu0 %v400
    %511 = vmatprep.subr.bf16.mxu0 0
    %512 = vmatpush1.bf16.msra.mxu0 %v401
    %513 = vmatprep.subr.bf16.mxu0 0
    %514 = vmatpush1.bf16.msra.mxu0 %v402
    %515 = vmatprep.subr.bf16.mxu0 0
    %516 = vmatpush1.bf16.msra.mxu0 %v403
    %517 = vmatprep.subr.bf16.mxu0 0
    %518 = vmatpush1.bf16.msra.mxu0 %v404
    %519 = vmatprep.subr.bf16.mxu0 0
    %520 = vmatpush1.bf16.msra.mxu0 %v405
    %521 = vmatprep.subr.bf16.mxu0 0
    %522 = vmatpush1.bf16.msra.mxu0 %v406
    %523 = vmatprep.subr.bf16.mxu0 0
    %524 = vmatpush1.bf16.msra.mxu0 %v407
    %525 = vmatprep.subr.bf16.mxu0 0
    %526 = vmatpush1.bf16.msra.mxu0 %v408
    %527 = vmatprep.mubr.bf16.mxu0 %v69
    %528 = vmatmul.mubr.bf16.gmra.mrb[0].mxu0 %v68
    %v529 = vpop.f32.mrb[0].mxu0
    %v530 = vadd.f32 %v195, %v529
    %v531 = vpop.f32.mrb[0].mxu0
    %v532 = vpop.f32.mrb[0].mxu0
    %v533 = vpop.f32.mrb[0].mxu0
    %534 = vdwg.mxu0
    %535 = vmatprep.subr.bf16.mxu0 0
    %536 = vmatpush1.bf16.msra.mxu0 %v409
    %537 = vmatprep.subr.bf16.mxu0 0
    %538 = vmatpush1.bf16.msra.mxu0 %v410
    %539 = vmatprep.subr.bf16.mxu0 0
    %540 = vmatpush1.bf16.msra.mxu0 %v411
    %541 = vmatprep.subr.bf16.mxu0 0
    %542 = vmatpush1.bf16.msra.mxu0 %v412
    %543 = vmatprep.subr.bf16.mxu0 0
    %544 = vmatpush1.bf16.msra.mxu0 %v413
    %545 = vmatprep.subr.bf16.mxu0 0
    %546 = vmatpush1.bf16.msra.mxu0 %v414
    %547 = vmatprep.subr.bf16.mxu0 0
    %548 = vmatpush1.bf16.msra.mxu0 %v415
    %549 = vmatprep.subr.bf16.mxu0 0
    %550 = vmatpush1.bf16.msra.mxu0 %v416
    %551 = vmatprep.subr.bf16.mxu0 0
    %552 = vmatpush1.bf16.msra.mxu0 %v417
    %553 = vmatprep.subr.bf16.mxu0 0
    %554 = vmatpush1.bf16.msra.mxu0 %v418
    %555 = vmatprep.subr.bf16.mxu0 0
    %556 = vmatpush1.bf16.msra.mxu0 %v419
    %557 = vmatprep.subr.bf16.mxu0 0
    %558 = vmatpush1.bf16.msra.mxu0 %v420
    %559 = vmatprep.subr.bf16.mxu0 0
    %560 = vmatpush1.bf16.msra.mxu0 %v421
    %561 = vmatprep.subr.bf16.mxu0 0
    %562 = vmatpush1.bf16.msra.mxu0 %v422
    %563 = vmatprep.subr.bf16.mxu0 0
    %564 = vmatpush1.bf16.msra.mxu0 %v423
    %565 = vmatprep.subr.bf16.mxu0 0
    %566 = vmatpush1.bf16.msra.mxu0 %v424
    %567 = vmatprep.mubr.bf16.mxu0 %v71
    %568 = vmatmul.mubr.bf16.gmra.mrb[0].mxu0 %v70
    %v569 = vpop.f32.mrb[0].mxu0
    %v570 = vadd.f32 %v530, %v569
    %v571 = vpop.f32.mrb[0].mxu0
    %v572 = vpop.f32.mrb[0].mxu0
    %v573 = vpop.f32.mrb[0].mxu0
    %574 = vdwg.mxu0
    %575 = vmatprep.subr.bf16.mxu0 0
    %576 = vmatpush1.bf16.msra.mxu0 %v425
    %577 = vmatprep.subr.bf16.mxu0 0
    %578 = vmatpush1.bf16.msra.mxu0 %v426
    %579 = vmatprep.subr.bf16.mxu0 0
    %580 = vmatpush1.bf16.msra.mxu0 %v427
    %581 = vmatprep.subr.bf16.mxu0 0
    %582 = vmatpush1.bf16.msra.mxu0 %v428
    %583 = vmatprep.subr.bf16.mxu0 0
    %584 = vmatpush1.bf16.msra.mxu0 %v429
    %585 = vmatprep.subr.bf16.mxu0 0
    %586 = vmatpush1.bf16.msra.mxu0 %v430
    %587 = vmatprep.subr.bf16.mxu0 0
    %588 = vmatpush1.bf16.msra.mxu0 %v431
    %589 = vmatprep.subr.bf16.mxu0 0
    %590 = vmatpush1.bf16.msra.mxu0 %v432
    %591 = vmatprep.subr.bf16.mxu0 0
    %592 = vmatpush1.bf16.msra.mxu0 %v433
    %593 = vmatprep.subr.bf16.mxu0 0
    %594 = vmatpush1.bf16.msra.mxu0 %v434
    %595 = vmatprep.subr.bf16.mxu0 0
    %596 = vmatpush1.bf16.msra.mxu0 %v435
    %597 = vmatprep.subr.bf16.mxu0 0
    %598 = vmatpush1.bf16.msra.mxu0 %v436
    %599 = vmatprep.subr.bf16.mxu0 0
    %600 = vmatpush1.bf16.msra.mxu0 %v437
    %601 = vmatprep.subr.bf16.mxu0 0
    %602 = vmatpush1.bf16.msra.mxu0 %v438
    %603 = vmatprep.subr.bf16.mxu0 0
    %604 = vmatpush1.bf16.msra.mxu0 %v439
    %605 = vmatprep.subr.bf16.mxu0 0
    %606 = vmatpush1.bf16.msra.mxu0 %v440
    %607 = vmatprep.mubr.bf16.mxu0 %v73
    %608 = vmatmul.mubr.bf16.gmra.mrb[0].mxu0 %v72
    %v609 = vpop.f32.mrb[0].mxu0
    %v610 = vadd.f32 %v570, %v609
    %v611 = vpop.f32.mrb[0].mxu0
    %v612 = vpop.f32.mrb[0].mxu0
    %v613 = vpop.f32.mrb[0].mxu0
    %614 = vdwg.mxu0
    %615 = vmatprep.subr.bf16.mxu0 0
    %616 = vmatpush1.bf16.msra.mxu0 %v441
    %617 = vmatprep.subr.bf16.mxu0 0
    %618 = vmatpush1.bf16.msra.mxu0 0
    %619 = vmatprep.subr.bf16.mxu0 0
    %620 = vmatpush1.bf16.msra.mxu0 0
    %621 = vmatprep.subr.bf16.mxu0 0
    %622 = vmatpush1.bf16.msra.mxu0 0
    %623 = vmatprep.subr.bf16.mxu0 0
    %624 = vmatpush1.bf16.msra.mxu0 0
    %625 = vmatprep.subr.bf16.mxu0 0
    %626 = vmatpush1.bf16.msra.mxu0 0
    %627 = vmatprep.subr.bf16.mxu0 0
    %628 = vmatpush1.bf16.msra.mxu0 0
    %629 = vmatprep.subr.bf16.mxu0 0
    %630 = vmatpush1.bf16.msra.mxu0 0
    %631 = vmatprep.subr.bf16.mxu0 0
    %632 = vmatpush1.bf16.msra.mxu0 0
    %633 = vmatprep.subr.bf16.mxu0 0
    %634 = vmatpush1.bf16.msra.mxu0 0
    %635 = vmatprep.subr.bf16.mxu0 0
    %636 = vmatpush1.bf16.msra.mxu0 0
    %637 = vmatprep.subr.bf16.mxu0 0
    %638 = vmatpush1.bf16.msra.mxu0 0
    %639 = vmatprep.subr.bf16.mxu0 0
    %640 = vmatpush1.bf16.msra.mxu0 0
    %641 = vmatprep.subr.bf16.mxu0 0
    %642 = vmatpush1.bf16.msra.mxu0 0
    %643 = vmatprep.subr.bf16.mxu0 0
    %644 = vmatpush1.bf16.msra.mxu0 0
    %645 = vmatprep.subr.bf16.mxu0 0
    %646 = vmatpush1.bf16.msra.mxu0 0
    %647 = vmatprep.mubr.bf16.mxu0 0
    %648 = vmatmul.mubr.bf16.gmra.mrb[0].mxu0 %v493
    %v649 = vpop.f32.mrb[0].mxu0
    %v650 = vadd.f32 %v610, %v649
    %v651 = vpop.f32.mrb[0].mxu0
    %v652 = vpop.f32.mrb[0].mxu0
    %v653 = vpop.f32.mrb[0].mxu0
    %654 = vdwg.mxu0
    %v655 = vmax.f32 %v650, 0.0
    %v656 = vpack.c.bf16 %v655, %v655
    %v658 = vlaneseq
    %v659 = vshrl.u32 %v658, 7
    %v660 = vsub.s32 0, %v659
    %v661 = vrot.slane %v190, %v660
    %v679 = vunpack.c.l.b16 %v174
    %v680 = vunpack.c.l.b16 %v175
    %v681 = vunpack.c.l.b16 %v176
    %v682 = vunpack.c.l.b16 %v177
    %v683 = vunpack.c.l.b16 %v178
    %v684 = vunpack.c.l.b16 %v179
    %v685 = vunpack.c.l.b16 %v180
    %v686 = vunpack.c.l.b16 %v181
    %v687 = vunpack.c.l.b16 %v182
    %v688 = vunpack.c.l.b16 %v183
    %v689 = vunpack.c.l.b16 %v184
    %v690 = vunpack.c.l.b16 %v185
    %v691 = vunpack.c.l.b16 %v186
    %v692 = vunpack.c.l.b16 %v187
    %v693 = vunpack.c.l.b16 %v188
    %v694 = vunpack.c.l.b16 %v189
    %v695 = vpack.c.b16 %v680, %v679
    %v696 = vpack.c.b16 %v682, %v681
    %v697 = vpack.c.b16 %v684, %v683
    %v698 = vpack.c.b16 %v686, %v685
    %v699 = vpack.c.b16 %v688, %v687
    %v700 = vpack.c.b16 %v690, %v689
    %v701 = vpack.c.b16 %v692, %v691
    %v702 = vpack.c.b16 %v694, %v693
    %711 = vmatprep.subr.bf16.mxu0 0
    %712 = vmatpush1.bf16.msra.mxu0 %v695
    %713 = vmatprep.subr.bf16.mxu0 0
    %714 = vmatpush1.bf16.msra.mxu0 %v696
    %715 = vmatprep.subr.bf16.mxu0 0
    %716 = vmatpush1.bf16.msra.mxu0 %v697
    %717 = vmatprep.subr.bf16.mxu0 0
    %718 = vmatpush1.bf16.msra.mxu0 %v698
    %719 = vmatprep.subr.bf16.mxu0 0
    %720 = vmatpush1.bf16.msra.mxu0 %v699
    %721 = vmatprep.subr.bf16.mxu0 0
    %722 = vmatpush1.bf16.msra.mxu0 %v700
    %723 = vmatprep.subr.bf16.mxu0 0
    %724 = vmatpush1.bf16.msra.mxu0 %v701
    %725 = vmatprep.subr.bf16.mxu0 0
    %726 = vmatpush1.bf16.msra.mxu0 %v702
    %727 = vmatprep.subr.bf16.mxu0 0
    %728 = vmatpush1.bf16.msra.mxu0 0
    %729 = vmatprep.subr.bf16.mxu0 0
    %730 = vmatpush1.bf16.msra.mxu0 0
    %731 = vmatprep.subr.bf16.mxu0 0
    %732 = vmatpush1.bf16.msra.mxu0 0
    %733 = vmatprep.subr.bf16.mxu0 0
    %734 = vmatpush1.bf16.msra.mxu0 0
    %735 = vmatprep.subr.bf16.mxu0 0
    %736 = vmatpush1.bf16.msra.mxu0 0
    %737 = vmatprep.subr.bf16.mxu0 0
    %738 = vmatpush1.bf16.msra.mxu0 0
    %739 = vmatprep.subr.bf16.mxu0 0
    %740 = vmatpush1.bf16.msra.mxu0 0
    %741 = vmatprep.subr.bf16.mxu0 0
    %742 = vmatpush1.bf16.msra.mxu0 0
    %743 = vmatprep.mubr.bf16.mxu0 0
    %744 = vmatmul.mubr.bf16.gmra.mrb[0].mxu0 %v656
    %v745 = vpop.f32.mrb[0].mxu0
    %v746 = vadd.f32 %v661, %v745
    %v747 = vpop.f32.mrb[0].mxu0
    %v748 = vpop.f32.mrb[0].mxu0
    %v749 = vpop.f32.mrb[0].mxu0
    %750 = vdwg.mxu0
    %751 = vst [vmem:[#allocation8] sm:$0xff] %v746
    // Predicated region
    $region34: #{tpu_custom_call.1} parent=1 // pred_check
      _
    $region35: #{tpu_custom_call.1} parent=1 // pred_check_branch
      %753 = sbr.rel (0) target = $region37
    $region36: #{tpu_custom_call.1} parent=1 // pred_region
      %s755 = ssub.s32 128, 128
      %756 = vsyncadd [#allocation4], %s755
      %s758 = sshll.u32 [#allocation8], 4
      %s759 = int_to_ptr.vmem [resolvable:$true] %s758
      %761 = dma.vmem_to_hbm [thread:$0]  %s759, 128, %s5, [#allocation4]
    $region37: #{tpu_custom_call.1} parent=1 // pred_fallthru
      _
    // Predicated region
    $region38: #{tpu_custom_call.1} parent=1 // pred_check
      _
    $region39: #{tpu_custom_call.1} parent=1 // pred_check_branch
      %763 = sbr.rel (0) target = $region41
    $region40: #{tpu_custom_call.1} parent=1 // pred_region
      %764 = dma.done [#allocation4], 128
    $region41: #{tpu_custom_call.1} parent=1 // pred_fallthru
      _
    %765 = vsyncpa [#allocation3], 1
    %766 = vsyncpa [#allocation6], 1
    %767 = vsyncpa [#allocation4], 1

</llo_original>
